<compile_context>
chip_gen: v5e
topology: v5e:2x2
jax: 0.10.0
libtpu: 0.0.40
codegen_flags: <defaults>
</compile_context>

<pallas_src>
import functools

import jax
import jax.numpy as jnp
from jax.experimental import pallas as pl
from jax.experimental.pallas import tpu as pltpu

LOG_STD_MIN = -20.0   # Actor0 defaults: log_std_min=-20, log_std_max=2, limit_std=1
LOG_STD_MAX = 2.0


def actor_kernel(xT_ref, w1_ref, b1_ref, w2_ref, b2_ref, w3_ref, b3_ref,
                 meanT_ref):
    # Layer 1: [hidden, in] @ [in, TM] -> [hidden, TM]; bf16 MXU, f32 accumulate.
    h1 = jnp.tanh(
        jnp.dot(w1_ref[...], xT_ref[...], preferred_element_type=jnp.float32)
        + b1_ref[...])
    # Layer 2: [hidden, hidden] @ [hidden, TM] -> [hidden, TM]
    h2 = jnp.tanh(
        jnp.dot(w2_ref[...], h1.astype(jnp.bfloat16),
                preferred_element_type=jnp.float32)
        + b2_ref[...])
    # Mean head: [out, hidden] @ [hidden, TM] -> [out, TM]; lane-dense store.
    meanT_ref[...] = (
        jnp.dot(w3_ref[...], h2.astype(jnp.bfloat16),
                preferred_element_type=jnp.float32)
        + b3_ref[...]).astype(meanT_ref.dtype)


def _choose_tm(batch, tm_max):
    """Pick a lane-axis batch tile: multiple of 128, >=2 tiles when B > 128."""
    tiles = max(1, pl.cdiv(batch, tm_max))
    if batch > 128:
        tiles = max(tiles, 2)          # give both v7x TensorCores work
    tm = ((pl.cdiv(batch, tiles) + 127) // 128) * 128   # round up to lane width
    return tm


@functools.partial(jax.jit, static_argnames=("tm_max",))
def actor0_forward(x, params, *, tm_max=8192):
    """x: [B, input_size] float32 -> (mean [B, out], std [B, out])."""
    w1, b1, w2, b2, w3, b3, log_std = params   # weights torch-style [out, in]
    B, in_size = x.shape
    hidden = w1.shape[0]
    out_size = w3.shape[0]

    tm = _choose_tm(B, tm_max)
    n_tiles = pl.cdiv(B, tm)
    Bp = n_tiles * tm                           # pad batch -> every tile is full
    grid = (n_tiles,)

    # Layout plumbing: batch on the lane axis, bf16 operands, f32 biases.
    xT = jnp.pad(x, ((0, Bp - B), (0, 0))).astype(jnp.bfloat16).T   # [in, Bp]
    w1b = w1.astype(jnp.bfloat16)
    w2b = w2.astype(jnp.bfloat16)
    w3b = w3.astype(jnp.bfloat16)
    b1c = b1.reshape(hidden, 1).astype(jnp.float32)
    b2c = b2.reshape(hidden, 1).astype(jnp.float32)
    b3c = b3.reshape(out_size, 1).astype(jnp.float32)

    resident = lambda i: (0, 0)   # weights/biases: same block every grid step

    flops = 2 * B * (in_size * hidden + hidden * hidden + hidden * out_size)
    transcendentals = 2 * B * hidden
    bytes_accessed = (Bp * in_size * 2 + Bp * out_size * 4
                      + 2 * (in_size * hidden + hidden * hidden
                             + hidden * out_size)
                      + 4 * (2 * hidden + out_size))

    meanT = pl.pallas_call(
        actor_kernel,
        out_shape=jax.ShapeDtypeStruct((out_size, Bp), jnp.float32),
        grid_spec=pltpu.PrefetchScalarGridSpec(
            num_scalar_prefetch=0,
            grid=grid,
            in_specs=[
                pl.BlockSpec((in_size, tm), lambda i: (0, i)),   # x^T: batch tiled on lanes
                pl.BlockSpec((hidden, in_size), resident),        # W1
                pl.BlockSpec((hidden, 1), resident),              # b1
                pl.BlockSpec((hidden, hidden), resident),         # W2
                pl.BlockSpec((hidden, 1), resident),              # b2
                pl.BlockSpec((out_size, hidden), resident),       # W3
                pl.BlockSpec((out_size, 1), resident),            # b3
            ],
            out_specs=pl.BlockSpec((out_size, tm), lambda i: (0, i)),
        ),
        compiler_params=pltpu.CompilerParams(
            dimension_semantics=("parallel",),          # v7x dual-TC batch split
            vmem_limit_bytes=32 * 1024 * 1024),         # explicit, safe on v5e/v6e/v7x
        cost_estimate=pl.CostEstimate(
            flops=flops,
            transcendentals=transcendentals,
            bytes_accessed=bytes_accessed),
    )(xT, w1b, b1c, w2b, b2c, w3b, b3c)

    mean = meanT[:, :B].T                               # back to [B, out]

    # std is x-independent: one tiny elementwise op outside the kernel.
    std_row = jnp.exp(jnp.clip(log_std.astype(jnp.float32),
                               LOG_STD_MIN, LOG_STD_MAX)).reshape(1, out_size)
    std = jnp.broadcast_to(std_row, mean.shape)
    return mean, std


def orthogonal_init(key, out_features, in_features, gain=1.0):
    """Deterministic orthogonal init (init-only; mirrors torch semantics)."""
    n = max(out_features, in_features)
    a = jax.random.normal(key, (n, n), dtype=jnp.float32)
    q, r = jnp.linalg.qr(a)
    d = jnp.diagonal(r)
    q = q * jnp.where(d >= 0, 1.0, -1.0)[None, :]
    return gain * q[:out_features, :in_features]


def make_params(key, input_size, output_size, hidden_size):
    k1, k2, k3 = jax.random.split(key, 3)
    gain = 2.0 ** 0.5
    # torch Linear weight layout: [out_features, in_features]
    w1 = orthogonal_init(k1, hidden_size, input_size, gain)
    b1 = jnp.zeros((hidden_size,), jnp.float32)
    w2 = orthogonal_init(k2, hidden_size, hidden_size, gain)
    b2 = jnp.zeros((hidden_size,), jnp.float32)
    w3 = orthogonal_init(k3, output_size, hidden_size, 1.0)
    b3 = jnp.zeros((output_size,), jnp.float32)
    log_std = jnp.zeros((1, output_size), jnp.float32)   # nn.Parameter(zeros(1, out))
    return (w1, b1, w2, b2, w3, b3, log_std)


if __name__ == "__main__":
    batch, input_size, hidden_size, output_size = 8, 16, 32, 8

    key = jax.random.PRNGKey(0)
    kx, kp = jax.random.split(key)
    x = jax.random.normal(kx, (batch, input_size), dtype=jnp.float32)
    params = make_params(kp, input_size, output_size, hidden_size)

    mean, std = actor0_forward(x, params)
    jax.block_until_ready((mean, std))

    # Reference with matched bf16 operand precision (f32 accumulation), pure JAX.
    w1, b1, w2, b2, w3, b3, log_std = params
    xb = x.astype(jnp.bfloat16)
    w1b, w2b, w3b = (w.astype(jnp.bfloat16) for w in (w1, w2, w3))
    h1r = jnp.tanh(jnp.dot(xb, w1b.T, preferred_element_type=jnp.float32) + b1)
    h2r = jnp.tanh(jnp.dot(h1r.astype(jnp.bfloat16), w2b.T,
                           preferred_element_type=jnp.float32) + b2)
    mean_ref = jnp.dot(h2r.astype(jnp.bfloat16), w3b.T,
                       preferred_element_type=jnp.float32) + b3
    # Full-precision sanity reference.
    mean_f32 = jnp.tanh(jnp.tanh(x @ w1.T + b1) @ w2.T + b2) @ w3.T + b3
    std_ref = jnp.broadcast_to(
        jnp.exp(jnp.clip(log_std, LOG_STD_MIN, LOG_STD_MAX)), mean_ref.shape)

    assert mean.shape == (batch, output_size) and std.shape == (batch, output_size)
    assert jnp.allclose(mean, mean_ref, atol=2e-2), "mean mismatch vs bf16 reference"
    assert jnp.allclose(mean, mean_f32, atol=1e-1), "mean mismatch vs f32 reference"
    assert jnp.allclose(std, std_ref, atol=1e-6), "std mismatch"

    print("KERNEL_OK")
</pallas_src>

<mosaic_0001>
module attributes {stable_mosaic.version = 11 : i64} {
  func.func @actor_kernel(%arg0: i32, %arg1: memref<16x128xbf16, #tpu.memory_space<vmem>>, %arg2: memref<32x16xbf16, #tpu.memory_space<vmem>>, %arg3: memref<32x1xf32, #tpu.memory_space<vmem>>, %arg4: memref<32x32xbf16, #tpu.memory_space<vmem>>, %arg5: memref<32x1xf32, #tpu.memory_space<vmem>>, %arg6: memref<8x32xbf16, #tpu.memory_space<vmem>>, %arg7: memref<8x1xf32, #tpu.memory_space<vmem>>, %arg8: memref<8x128xf32, #tpu.memory_space<vmem>>) attributes {dimension_semantics = [#tpu.dimension_semantics<parallel>], iteration_bounds = array<i64: 1>, scalar_prefetch = 0 : i64, scratch_operands = 0 : i64, tpu.core_type = #tpu.core_type<tc>, window_params = [{transform_indices = @transform_0, window_bounds = array<i64: 16, 128>}, {pipeline_mode = #tpu.pipeline_mode<synchronous>, transform_indices = @transform_1, window_bounds = array<i64: 32, 16>}, {pipeline_mode = #tpu.pipeline_mode<synchronous>, transform_indices = @transform_2, window_bounds = array<i64: 32, 1>}, {pipeline_mode = #tpu.pipeline_mode<synchronous>, transform_indices = @transform_3, window_bounds = array<i64: 32, 32>}, {pipeline_mode = #tpu.pipeline_mode<synchronous>, transform_indices = @transform_4, window_bounds = array<i64: 32, 1>}, {pipeline_mode = #tpu.pipeline_mode<synchronous>, transform_indices = @transform_5, window_bounds = array<i64: 8, 32>}, {pipeline_mode = #tpu.pipeline_mode<synchronous>, transform_indices = @transform_6, window_bounds = array<i64: 8, 1>}, {transform_indices = @transform_7, window_bounds = array<i64: 8, 128>}]} {
    %c0 = arith.constant 0 : index
    %c0_0 = arith.constant 0 : index
    %0 = vector.load %arg2[%c0, %c0_0] : memref<32x16xbf16, #tpu.memory_space<vmem>>, vector<32x16xbf16>
    %c0_1 = arith.constant 0 : index
    %c0_2 = arith.constant 0 : index
    %1 = vector.load %arg1[%c0_1, %c0_2] : memref<16x128xbf16, #tpu.memory_space<vmem>>, vector<16x128xbf16>
    %cst = arith.constant dense<0.000000e+00> : vector<32x128xf32>
    %2 = tpu.matmul %0, %1, %cst {dimension_numbers = #tpu.dot_dimension_numbers<[1], [0], [0], [1], [0, 0, 1, 1], [], []>} : vector<32x16xbf16>, vector<16x128xbf16>, vector<32x128xf32> -> vector<32x128xf32>
    %c0_3 = arith.constant 0 : index
    %c0_4 = arith.constant 0 : index
    %3 = vector.load %arg3[%c0_3, %c0_4] : memref<32x1xf32, #tpu.memory_space<vmem>>, vector<32x1xf32>
    %4 = vector.broadcast %3 : vector<32x1xf32> to vector<32x128xf32>
    %5 = arith.addf %2, %4 : vector<32x128xf32>
    %6 = math.tanh %5 : vector<32x128xf32>
    %c0_5 = arith.constant 0 : index
    %c0_6 = arith.constant 0 : index
    %7 = vector.load %arg4[%c0_5, %c0_6] : memref<32x32xbf16, #tpu.memory_space<vmem>>, vector<32x32xbf16>
    %8 = arith.truncf %6 : vector<32x128xf32> to vector<32x128xbf16>
    %cst_7 = arith.constant dense<0.000000e+00> : vector<32x128xf32>
    %9 = tpu.matmul %7, %8, %cst_7 {dimension_numbers = #tpu.dot_dimension_numbers<[1], [0], [0], [1], [0, 0, 1, 1], [], []>} : vector<32x32xbf16>, vector<32x128xbf16>, vector<32x128xf32> -> vector<32x128xf32>
    %c0_8 = arith.constant 0 : index
    %c0_9 = arith.constant 0 : index
    %10 = vector.load %arg5[%c0_8, %c0_9] : memref<32x1xf32, #tpu.memory_space<vmem>>, vector<32x1xf32>
    %11 = vector.broadcast %10 : vector<32x1xf32> to vector<32x128xf32>
    %12 = arith.addf %9, %11 : vector<32x128xf32>
    %13 = math.tanh %12 : vector<32x128xf32>
    %c0_10 = arith.constant 0 : index
    %c0_11 = arith.constant 0 : index
    %14 = vector.load %arg6[%c0_10, %c0_11] : memref<8x32xbf16, #tpu.memory_space<vmem>>, vector<8x32xbf16>
    %15 = arith.truncf %13 : vector<32x128xf32> to vector<32x128xbf16>
    %cst_12 = arith.constant dense<0.000000e+00> : vector<8x128xf32>
    %16 = tpu.matmul %14, %15, %cst_12 {dimension_numbers = #tpu.dot_dimension_numbers<[1], [0], [0], [1], [0, 0, 1, 1], [], []>} : vector<8x32xbf16>, vector<32x128xbf16>, vector<8x128xf32> -> vector<8x128xf32>
    %c0_13 = arith.constant 0 : index
    %c0_14 = arith.constant 0 : index
    %17 = vector.load %arg7[%c0_13, %c0_14] : memref<8x1xf32, #tpu.memory_space<vmem>>, vector<8x1xf32>
    %18 = vector.broadcast %17 : vector<8x1xf32> to vector<8x128xf32>
    %19 = arith.addf %16, %18 : vector<8x128xf32>
    %c0_15 = arith.constant 0 : index
    %c0_16 = arith.constant 0 : index
    %20 = vector.load %arg8[%c0_15, %c0_16] : memref<8x128xf32, #tpu.memory_space<vmem>>, vector<8x128xf32>
    tpu.vector_store %arg8[%c0_15, %c0_16], %19 {strides = array<i32>} : memref<8x128xf32, #tpu.memory_space<vmem>>, vector<8x128xf32>,
    return
  }
  func.func @transform_0(%arg0: i32) -> (i32, i32) {
    %c0_i32 = arith.constant 0 : i32
    %c0_i32_0 = arith.constant 0 : i32
    return %c0_i32, %arg0 : i32, i32
  }
  func.func @transform_1(%arg0: i32) -> (i32, i32) {
    %c0_i32 = arith.constant 0 : i32
    %c0_i32_0 = arith.constant 0 : i32
    %c0_i32_1 = arith.constant 0 : i32
    return %c0_i32, %c0_i32_0 : i32, i32
  }
  func.func @transform_2(%arg0: i32) -> (i32, i32) {
    %c0_i32 = arith.constant 0 : i32
    %c0_i32_0 = arith.constant 0 : i32
    %c0_i32_1 = arith.constant 0 : i32
    return %c0_i32, %c0_i32_0 : i32, i32
  }
  func.func @transform_3(%arg0: i32) -> (i32, i32) {
    %c0_i32 = arith.constant 0 : i32
    %c0_i32_0 = arith.constant 0 : i32
    %c0_i32_1 = arith.constant 0 : i32
    return %c0_i32, %c0_i32_0 : i32, i32
  }
  func.func @transform_4(%arg0: i32) -> (i32, i32) {
    %c0_i32 = arith.constant 0 : i32
    %c0_i32_0 = arith.constant 0 : i32
    %c0_i32_1 = arith.constant 0 : i32
    return %c0_i32, %c0_i32_0 : i32, i32
  }
  func.func @transform_5(%arg0: i32) -> (i32, i32) {
    %c0_i32 = arith.constant 0 : i32
    %c0_i32_0 = arith.constant 0 : i32
    %c0_i32_1 = arith.constant 0 : i32
    return %c0_i32, %c0_i32_0 : i32, i32
  }
  func.func @transform_6(%arg0: i32) -> (i32, i32) {
    %c0_i32 = arith.constant 0 : i32
    %c0_i32_0 = arith.constant 0 : i32
    %c0_i32_1 = arith.constant 0 : i32
    return %c0_i32, %c0_i32_0 : i32, i32
  }
  func.func @transform_7(%arg0: i32) -> (i32, i32) {
    %c0_i32 = arith.constant 0 : i32
    %c0_i32_0 = arith.constant 0 : i32
    return %c0_i32, %arg0 : i32, i32
  }
}

</mosaic_0001>

<llo_original>
// kernel: actor0_forward.1
$region0: #{actor0_forward.1}
  #allocation0 [shape = 'u32[]', space=smem, size = 0x4, offset = 0x4, fixed_abs, tag = 'smem constant byte address 0x4 - core index']
  #allocation1 [shape = 'u32[72,128]{1,0:T(1,128)}', space=vmem, size = 0x9000, scoped, tag = 'internal scratch']
  %s0 = inlined_call_operand.vmem [shape: bf16[16,128], index: 0, kind: input, shape index: {}]
  %s1 = inlined_call_operand.vmem [shape: bf16[32,16], index: 1, kind: input, shape index: {}]
  %s2 = inlined_call_operand.vmem [shape: f32[32,1], index: 2, kind: input, shape index: {}]
  %s3 = inlined_call_operand.vmem [shape: bf16[32,32], index: 3, kind: input, shape index: {}]
  %s4 = inlined_call_operand.vmem [shape: f32[32,1], index: 4, kind: input, shape index: {}]
  %s5 = inlined_call_operand.vmem [shape: bf16[8,32], index: 5, kind: input, shape index: {}]
  %s6 = inlined_call_operand.vmem [shape: f32[8,1], index: 6, kind: input, shape index: {}]
  %s7 = inlined_call_operand.vmem [shape: f32[8,128], index: 7, kind: output, shape index: {}]
  %s8 = sld [smem:[#allocation0]]
  $region38: #{actor0_forward.1} parent=0
    _
  %s10 = ssub.s32 1, %s8
  %s11 = scalar_select 0, %s10, %s8
  // Predicated region
  $region2: #{actor0_forward.1} parent=0 // pred_check
    _
  $region3: #{actor0_forward.1} parent=0 // pred_check_branch
    %13 = sbr.rel (0) target = $region5
  $region4: #{actor0_forward.1} parent=0 // pred_region
    _
  $region5: #{actor0_forward.1} parent=0 // pred_fallthru
    _
  // Predicated region
  $region6: #{actor0_forward.1} parent=0 // pred_check
    _
  $region7: #{actor0_forward.1} parent=0 // pred_check_branch
    %15 = sbr.rel (0) target = $region9
  $region8: #{actor0_forward.1} parent=0 // pred_region
    _
  $region9: #{actor0_forward.1} parent=0 // pred_fallthru
    _
  // Predicated region
  $region10: #{actor0_forward.1} parent=0 // pred_check
    _
  $region11: #{actor0_forward.1} parent=0 // pred_check_branch
    %17 = sbr.rel (0) target = $region13
  $region12: #{actor0_forward.1} parent=0 // pred_region
    _
  $region13: #{actor0_forward.1} parent=0 // pred_fallthru
    _
  // Predicated region
  $region14: #{actor0_forward.1} parent=0 // pred_check
    _
  $region15: #{actor0_forward.1} parent=0 // pred_check_branch
    %19 = sbr.rel (0) target = $region17
  $region16: #{actor0_forward.1} parent=0 // pred_region
    _
  $region17: #{actor0_forward.1} parent=0 // pred_fallthru
    _
  // Predicated region
  $region18: #{actor0_forward.1} parent=0 // pred_check
    _
  $region19: #{actor0_forward.1} parent=0 // pred_check_branch
    %21 = sbr.rel (0) target = $region21
  $region20: #{actor0_forward.1} parent=0 // pred_region
    _
  $region21: #{actor0_forward.1} parent=0 // pred_fallthru
    _
  // Predicated region
  $region22: #{actor0_forward.1} parent=0 // pred_check
    _
  $region23: #{actor0_forward.1} parent=0 // pred_check_branch
    %23 = sbr.rel (0) target = $region25
  $region24: #{actor0_forward.1} parent=0 // pred_region
    _
  $region25: #{actor0_forward.1} parent=0 // pred_fallthru
    _
  // Predicated region
  $region26: #{actor0_forward.1} parent=0 // pred_check
    _
  $region27: #{actor0_forward.1} parent=0 // pred_check_branch
    %25 = sbr.rel (0) target = $region29
  $region28: #{actor0_forward.1} parent=0 // pred_region
    _
  $region29: #{actor0_forward.1} parent=0 // pred_fallthru
    _
  %v27 = vld [vmem:[%s1] sm:$0xf]
  %v28 = vld [vmem:[%s1 + $0x4] sm:$0xf]
  %v29 = vld [vmem:[%s1 + $0x8] sm:$0xf]
  %v30 = vld [vmem:[%s1 + $0xc] sm:$0xf]
  %v31 = vld [vmem:[%s0] sm:$0xf]
  %v32 = vld [vmem:[%s0 + $0x4] sm:$0xf]
  %v33 = vld [vmem:[%s2] sm:$0xff]
  %v34 = vld [vmem:[%s2 + $0x8] sm:$0xff]
  %v35 = vld [vmem:[%s2 + $0x10] sm:$0xff]
  %v36 = vld [vmem:[%s2 + $0x18] sm:$0xff]
  %38 = vset.pattern.permute.xlu0 0
  %39 = vperm.xlu0 %38, %v33
  %v40 = vpop.permute.xlu0 %39
  %43 = vset.pattern.permute.xlu0 0
  %44 = vperm.xlu0 %43, %v34
  %v45 = vpop.permute.xlu0 %44
  %48 = vset.pattern.permute.xlu0 0
  %49 = vperm.xlu0 %48, %v35
  %v50 = vpop.permute.xlu0 %49
  %53 = vset.pattern.permute.xlu0 0
  %54 = vperm.xlu0 %53, %v36
  %v55 = vpop.permute.xlu0 %54
  %v61 = vunpack.c.l.b16 %v27
  %v62 = vunpack.c.l.b16 %v28
  %v63 = vunpack.c.l.b16 %v29
  %v64 = vunpack.c.l.b16 %v30
  %v65 = vpack.c.b16 %v62, %v61
  %v66 = vpack.c.b16 %v64, %v63
  %v69 = vunpack.c.l.b16 %v31
  %v70 = vunpack.c.l.b16 %v32
  %v71 = vpack.c.b16 %v70, %v69
  %vm73 = vcmask 130048
  %v75 = vsel %vm73, %v65, 0
  %v78 = vsel %vm73, %v66, 0
  %80 = vmatpush.bf16.msra.mxu0 0
  %81 = vmatpush.bf16.msra.mxu0 0
  %82 = vmatpush.bf16.msra.mxu0 0
  %83 = vmatpush.bf16.msra.mxu0 0
  %84 = vmatpush.bf16.msra.mxu0 0
  %85 = vmatpush.bf16.msra.mxu0 0
  %86 = vmatpush.bf16.msra.mxu0 0
  %87 = vmatpush.bf16.msra.mxu0 %v71
  %88 = vmatmul.bf16.gmra.mxu0 %v75
  %v89 = vpop.f32.mrf.mxu0
  %v90 = vadd.f32 %v40, %v89
  %v91 = vpop.f32.mrf.mxu0
  %v92 = vadd.f32 %v45, %v91
  %93 = vmatmul.bf16.gmra.mxu0 %v78
  %v94 = vpop.f32.mrf.mxu0
  %v95 = vadd.f32 %v50, %v94
  %v96 = vpop.f32.mrf.mxu0
  %v97 = vadd.f32 %v55, %v96
  %98 = vdwg.mxu0
  %v99 = vtanh.pop %v90
  %v100 = vtanh.pop %v92
  %v101 = vtanh.pop %v95
  %v102 = vtanh.pop %v97
  %v103 = vld [vmem:[%s3] sm:$0xf]
  %v104 = vld [vmem:[%s3 + $0x4] sm:$0xf]
  %v105 = vld [vmem:[%s3 + $0x8] sm:$0xf]
  %v106 = vld [vmem:[%s3 + $0xc] sm:$0xf]
  %v107 = vpack.c.bf16 %v100, %v99
  %v108 = vpack.c.bf16 %v102, %v101
  %v109 = vld [vmem:[%s4] sm:$0xff]
  %v110 = vld [vmem:[%s4 + $0x8] sm:$0xff]
  %v111 = vld [vmem:[%s4 + $0x10] sm:$0xff]
  %v112 = vld [vmem:[%s4 + $0x18] sm:$0xff]
  %114 = vset.pattern.permute.xlu0 0
  %115 = vperm.xlu0 %114, %v109
  %v116 = vpop.permute.xlu0 %115
  %119 = vset.pattern.permute.xlu0 0
  %120 = vperm.xlu0 %119, %v110
  %v121 = vpop.permute.xlu0 %120
  %124 = vset.pattern.permute.xlu0 0
  %125 = vperm.xlu0 %124, %v111
  %v126 = vpop.permute.xlu0 %125
  %129 = vset.pattern.permute.xlu0 0
  %130 = vperm.xlu0 %129, %v112
  %v131 = vpop.permute.xlu0 %130
  %v137 = vunpack.c.l.b16 %v103
  %v138 = vunpack.c.l.b16 %v104
  %v139 = vunpack.c.l.b16 %v105
  %v140 = vunpack.c.l.b16 %v106
  %v141 = vpack.c.b16 %v138, %v137
  %v142 = vpack.c.b16 %v140, %v139
  %vm143 = vcmask 261120
  %v145 = vsel %vm143, %v141, 0
  %v148 = vsel %vm143, %v142, 0
  %150 = vmatpush.bf16.msra.mxu0 0
  %151 = vmatpush.bf16.msra.mxu0 0
  %152 = vmatpush.bf16.msra.mxu0 0
  %153 = vmatpush.bf16.msra.mxu0 0
  %154 = vmatpush.bf16.msra.mxu0 0
  %155 = vmatpush.bf16.msra.mxu0 0
  %156 = vmatpush.bf16.msra.mxu0 %v108
  %157 = vmatpush.bf16.msra.mxu0 %v107
  %158 = vmatmul.bf16.gmra.mxu0 %v145
  %v159 = vpop.f32.mrf.mxu0
  %v160 = vadd.f32 %v116, %v159
  %v161 = vpop.f32.mrf.mxu0
  %v162 = vadd.f32 %v121, %v161
  %163 = vmatmul.bf16.gmra.mxu0 %v148
  %v164 = vpop.f32.mrf.mxu0
  %v165 = vadd.f32 %v126, %v164
  %v166 = vpop.f32.mrf.mxu0
  %v167 = vadd.f32 %v131, %v166
  %168 = vdwg.mxu0
  %v169 = vtanh.pop %v160
  %v170 = vtanh.pop %v162
  %v171 = vtanh.pop %v165
  %v172 = vtanh.pop %v167
  %v173 = vld [vmem:[%s5] sm:$0xf]
  %v174 = vpack.c.bf16 %v170, %v169
  %v175 = vpack.c.bf16 %v172, %v171
  %v176 = vld [vmem:[%s6] sm:$0xff]
  %178 = vset.pattern.permute.xlu0 0
  %179 = vperm.xlu0 %178, %v176
  %v180 = vpop.permute.xlu0 %179
  %v183 = vsel %vm143, %v173, 0
  %185 = vmatpush.bf16.msra.mxu0 0
  %186 = vmatpush.bf16.msra.mxu0 0
  %187 = vmatpush.bf16.msra.mxu0 0
  %188 = vmatpush.bf16.msra.mxu0 0
  %189 = vmatpush.bf16.msra.mxu0 0
  %190 = vmatpush.bf16.msra.mxu0 0
  %191 = vmatpush.bf16.msra.mxu0 %v175
  %192 = vmatpush.bf16.msra.mxu0 %v174
  %193 = vmatmul.bf16.gmra.mxu0 %v183
  %v194 = vpop.f32.mrf.mxu0
  %v195 = vadd.f32 %v180, %v194
  %v196 = vpop.f32.mrf.mxu0
  %197 = vdwg.mxu0
  %198 = vst [vmem:[%s7] sm:$0xff] %v195
  // Predicated region
  $region30: #{actor0_forward.1} parent=0 // pred_check
    _
  $region31: #{actor0_forward.1} parent=0 // pred_check_branch
    %200 = sbr.rel (0) target = $region33
  $region32: #{actor0_forward.1} parent=0 // pred_region
    _
  $region33: #{actor0_forward.1} parent=0 // pred_fallthru
    _
  // Predicated region
  $region34: #{actor0_forward.1} parent=0 // pred_check
    _
  $region35: #{actor0_forward.1} parent=0 // pred_check_branch
    %202 = sbr.rel (0) target = $region37
  $region36: #{actor0_forward.1} parent=0 // pred_region
    _
  $region37: #{actor0_forward.1} parent=0 // pred_fallthru
    _

</llo_original>
